<compile_context>
chip_gen: v7x
topology: tpu7x:2x2x1
jax: 0.10.0
libtpu: 0.0.40
codegen_flags: <defaults>
</compile_context>

<pallas_src>
import jax
import jax.numpy as jnp
import numpy as np
from jax.experimental import pallas as pl
from jax.experimental.pallas import tpu as pltpu

# ------------------------- model hyper-parameters ---------------------------
NUM_JOINTS_IN = 4
IN_FEATURES = 2           # 2-D keypoints (required by the 'lcn' residual branch)
NUM_JOINTS_OUT = 4
FILTER_WIDTHS = (1,)      # odd filter widths only (assert in reference __init__)
CHANNELS = 32
NORM = "lcn"              # args.norm in the reference script
BN_EPS = 1e-5
LEAKY_SLOPE = 0.01

B = 2                     # batch
T = 8                     # sequence length (frames)

C_IN = NUM_JOINTS_IN * IN_FEATURES      # 8
C_AUG = C_IN + 1                        # 9  ([x | 1] -- ones column folds biases)
C_OUT = NUM_JOINTS_OUT * 3              # 12

# Merged weight-slab layout (rows, all sub-blocks sublane-aligned):
EXPAND_ROWS = 16                        # rows 0..8 = [W_expand*bn_scale ; folded bias], 9..15 zero pad
SHRINK_ROW0 = EXPAND_ROWS               # rows 16..47 = W_shrink
RESID_ROW0 = EXPAND_ROWS + CHANNELS     # rows 48..56 = [lcn projection ; b_shrink]
SLAB_ROWS = RESID_ROW0 + C_AUG          # 57
SLAB_COLS = CHANNELS                    # 32 (shrink/resid blocks zero-padded 12 -> 32 lanes)


# ------------------------------- Pallas kernel ------------------------------
def _fc_block_kernel(x_ref, w_ref, o_ref):
    """shrink(leaky_relu(bn(expand(x)))) + lcn residual, whole problem in one shot.

    x_ref: (M, C_AUG)            rows = flattened batch*time, cols = [x | 1]
    w_ref: (SLAB_ROWS, SLAB_COLS) merged weight slab (see layout above)
    o_ref: (M, C_OUT)
    """
    xa = x_ref[...]                                                  # (M, 9) f32
    w = w_ref[...]                                                   # (57, 32) f32

    w_expand = w[:C_AUG, :]                                          # (9, 32)
    w_shrink = w[SHRINK_ROW0:SHRINK_ROW0 + CHANNELS, :C_OUT]         # (32, 12)
    w_resid = w[RESID_ROW0:RESID_ROW0 + C_AUG, :C_OUT]               # (9, 12)

    # expand 1x1 conv with BatchNorm (eval) and bias folded in via the ones column.
    h = jnp.dot(xa, w_expand, preferred_element_type=jnp.float32)    # (M, 32)

    # LeakyReLU(0.01) as mul+max (2 VPU ops); Dropout in eval mode == identity.
    h = jnp.maximum(h, LEAKY_SLOPE * h)

    # shrink 1x1 conv; then shrink bias + 'lcn' residual (x scattered onto the
    # x/y output columns) in one small matmul sharing the xa operand.
    y = jnp.dot(h, w_shrink, preferred_element_type=jnp.float32)     # (M, 12)
    y = y + jnp.dot(xa, w_resid, preferred_element_type=jnp.float32)

    o_ref[...] = y.astype(o_ref.dtype)


def _forward_blocks_pallas(x_aug, w_slab):
    """x_aug: (M, C_AUG) with M = B*T.  Returns (M, C_OUT) incl. lcn residual."""
    m = x_aug.shape[0]
    vmem = pltpu.MemorySpace.VMEM
    return pl.pallas_call(
        _fc_block_kernel,
        out_shape=jax.ShapeDtypeStruct((m, C_OUT), jnp.float32),
        in_specs=[
            pl.BlockSpec(memory_space=vmem),   # x_aug, full array
            pl.BlockSpec(memory_space=vmem),   # merged weight slab, full array
        ],
        out_specs=pl.BlockSpec(memory_space=vmem),
    )(x_aug, w_slab)


# --------------------------- parameter folding -------------------------------
def fold_params(p):
    """Fold BN(eval) + biases + the lcn residual projection into ONE weight slab.

    NOTE: valid for eval-mode BatchNorm (fixed running stats) only; the folded slab
    is not usable for training-mode BN.
    """
    # BN (eval) folded into the expand conv:  (x@W + b)*s + t  ==  x @ (W*s) + (b*s + t)
    w_e = p["w_expand"] * p["bn_scale"]                       # (C_IN, CHANNELS)
    b_e = p["b_expand"] * p["bn_scale"] + p["bn_shift"]       # (1, CHANNELS)
    expand = jnp.concatenate([w_e, b_e], axis=0)              # (9, 32)
    expand = jnp.pad(expand, ((0, EXPAND_ROWS - C_AUG), (0, 0)))   # (16, 32)

    # 0/1 projection mapping flat 2-D input columns onto the x/y columns of the
    # flat 3-D output (the 'lcn' residual); zero matrix if norm != 'lcn'.
    proj = np.zeros((C_IN, C_OUT), np.float32)
    if NORM == "lcn":
        for j in range(NUM_JOINTS_OUT):
            proj[2 * j + 0, 3 * j + 0] = 1.0
            proj[2 * j + 1, 3 * j + 1] = 1.0

    # residual block rows match xa = [x(8) | 1]: [proj ; b_shrink]
    resid = jnp.concatenate([jnp.asarray(proj), p["b_shrink"]], axis=0)   # (9, 12)
    shrink = jnp.concatenate([p["w_shrink"], resid], axis=0)              # (41, 12)
    shrink = jnp.pad(shrink, ((0, 0), (0, SLAB_COLS - C_OUT)))            # (41, 32)

    slab = jnp.concatenate([expand, shrink], axis=0)                      # (57, 32)
    assert slab.shape == (SLAB_ROWS, SLAB_COLS), slab.shape
    return slab


# ------------------------------ forward wrapper ------------------------------
@jax.jit
def temporal_model_forward(x, w_slab):
    """Mirrors TemporalModelBase.forward (eval mode).

    x: (B, T, num_joints_in, in_features) float32.
    Returns y: (B, T, num_joints_out, 3).
    """
    assert x.ndim == 4
    assert x.shape[-2] == NUM_JOINTS_IN
    assert x.shape[-1] == IN_FEATURES
    b, t = x.shape[0], x.shape[1]

    # view(B, T, -1) + permute(0,2,1) -> Conv1d NCT; a 1x1 conv over NCT is a
    # per-(b,t) matmul, so flatten rows and append a ones column (bias folding).
    x_flat = x.reshape(b * t, C_IN)
    x_aug = jnp.concatenate([x_flat, jnp.ones((b * t, 1), x.dtype)], axis=1)

    y_flat = _forward_blocks_pallas(x_aug, w_slab)

    # 'lcn' residual and [xy | z] packing already happened inside the kernel;
    # only the final (free) view back to (B, T, J, 3) remains.
    return y_flat.reshape(b, t, NUM_JOINTS_OUT, 3)


# ------------------------- deterministic parameter init ----------------------
def init_params(key):
    ks = jax.random.split(key, 8)
    w_expand = 0.1 * jax.random.normal(ks[0], (C_IN, CHANNELS), jnp.float32)
    b_expand = 0.1 * jax.random.normal(ks[1], (1, CHANNELS), jnp.float32)
    w_shrink = 0.1 * jax.random.normal(ks[2], (CHANNELS, C_OUT), jnp.float32)
    b_shrink = 0.1 * jax.random.normal(ks[3], (1, C_OUT), jnp.float32)
    # BatchNorm1d running stats + affine, expressed as scale/shift (eval mode)
    gamma = 1.0 + 0.1 * jax.random.normal(ks[4], (1, CHANNELS), jnp.float32)
    beta = 0.1 * jax.random.normal(ks[5], (1, CHANNELS), jnp.float32)
    running_mean = 0.1 * jax.random.normal(ks[6], (1, CHANNELS), jnp.float32)
    running_var = jnp.abs(1.0 + 0.1 * jax.random.normal(ks[7], (1, CHANNELS),
                                                        jnp.float32))
    bn_scale = gamma * jax.lax.rsqrt(running_var + BN_EPS)
    bn_shift = beta - running_mean * bn_scale
    return dict(w_expand=w_expand, b_expand=b_expand,
                w_shrink=w_shrink, b_shrink=b_shrink,
                bn_scale=bn_scale, bn_shift=bn_shift)


# --------------------------------- reference ---------------------------------
def _reference_forward(x, p):
    x_flat = x.reshape(B * T, C_IN)
    h = jnp.dot(x_flat, p["w_expand"], precision="highest") + p["b_expand"]
    h = h * p["bn_scale"] + p["bn_shift"]
    h = jnp.where(h >= 0.0, h, LEAKY_SLOPE * h)
    y = jnp.dot(h, p["w_shrink"], precision="highest") + p["b_shrink"]
    y = y.reshape(B, T, NUM_JOINTS_OUT, 3)
    if NORM == "lcn":
        y = jnp.concatenate([x + y[..., :2], y[..., 2:3]], axis=-1)
    return y


if __name__ == "__main__":
    key = jax.random.PRNGKey(0)
    k_x, k_p = jax.random.split(key)
    x = jax.random.normal(k_x, (B, T, NUM_JOINTS_IN, IN_FEATURES), jnp.float32)
    params = init_params(k_p)
    w_slab = fold_params(params)

    y = temporal_model_forward(x, w_slab)
    y = jax.block_until_ready(y)

    assert y.shape == (B, T, NUM_JOINTS_OUT, 3), y.shape
    y_ref = jax.block_until_ready(_reference_forward(x, params))
    np.testing.assert_allclose(np.asarray(y), np.asarray(y_ref),
                               rtol=1e-3, atol=1e-3)
    print("KERNEL_OK")
</pallas_src>

<mosaic_0001>
module attributes {stable_mosaic.version = 11 : i64} {
  func.func @_fc_block_kernel(%arg0: memref<16x9xf32, #tpu.memory_space<vmem>>, %arg1: memref<57x32xf32, #tpu.memory_space<vmem>>, %arg2: memref<16x12xf32, #tpu.memory_space<vmem>>) attributes {dimension_semantics = [], scalar_prefetch = 0 : i64, scratch_operands = 0 : i64, tpu.core_type = #tpu.core_type<tc>} {
    %c0 = arith.constant 0 : index
    %c0_0 = arith.constant 0 : index
    %0 = vector.load %arg0[%c0, %c0_0] : memref<16x9xf32, #tpu.memory_space<vmem>>, vector<16x9xf32>
    %c0_1 = arith.constant 0 : index
    %c0_2 = arith.constant 0 : index
    %1 = vector.load %arg1[%c0_1, %c0_2] : memref<57x32xf32, #tpu.memory_space<vmem>>, vector<57x32xf32>
    %2 = vector.extract_strided_slice %1 {offsets = [0, 0], sizes = [9, 32], strides = [1, 1]} : vector<57x32xf32> to vector<9x32xf32>
    %3 = vector.extract_strided_slice %1 {offsets = [16, 0], sizes = [32, 12], strides = [1, 1]} : vector<57x32xf32> to vector<32x12xf32>
    %4 = vector.extract_strided_slice %1 {offsets = [48, 0], sizes = [9, 12], strides = [1, 1]} : vector<57x32xf32> to vector<9x12xf32>
    %cst = arith.constant dense<0.000000e+00> : vector<16x32xf32>
    %5 = tpu.matmul %0, %2, %cst {dimension_numbers = #tpu.dot_dimension_numbers<[1], [0], [0], [1], [0, 0, 1, 1], [], []>} : vector<16x9xf32>, vector<9x32xf32>, vector<16x32xf32> -> vector<16x32xf32>
    %cst_3 = arith.constant 0.00999999977 : f32
    %6 = vector.broadcast %cst_3 : f32 to vector<16x32xf32>
    %7 = arith.mulf %6, %5 : vector<16x32xf32>
    %8 = arith.maximumf %5, %7 : vector<16x32xf32>
    %cst_4 = arith.constant dense<0.000000e+00> : vector<16x12xf32>
    %9 = tpu.matmul %8, %3, %cst_4 {dimension_numbers = #tpu.dot_dimension_numbers<[1], [0], [0], [1], [0, 0, 1, 1], [], []>} : vector<16x32xf32>, vector<32x12xf32>, vector<16x12xf32> -> vector<16x12xf32>
    %cst_5 = arith.constant dense<0.000000e+00> : vector<16x12xf32>
    %10 = tpu.matmul %0, %4, %cst_5 {dimension_numbers = #tpu.dot_dimension_numbers<[1], [0], [0], [1], [0, 0, 1, 1], [], []>} : vector<16x9xf32>, vector<9x12xf32>, vector<16x12xf32> -> vector<16x12xf32>
    %11 = arith.addf %9, %10 : vector<16x12xf32>
    %c0_6 = arith.constant 0 : index
    %c0_7 = arith.constant 0 : index
    %12 = vector.load %arg2[%c0_6, %c0_7] : memref<16x12xf32, #tpu.memory_space<vmem>>, vector<16x12xf32>
    tpu.vector_store %arg2[%c0_6, %c0_7], %11 {strides = array<i32>} : memref<16x12xf32, #tpu.memory_space<vmem>>, vector<16x12xf32>,
    return
  }
}

</mosaic_0001>

<llo_original>
// kernel: temporal_model_forward.1
$region0: #{temporal_model_forward.1}
  #allocation0 [shape = 'u32[]', space=smem, size = 0x4, offset = 0x4, fixed_abs, tag = 'smem constant byte address 0x4 - core index']
  #allocation1 [shape = 'u32[144,128]{1,0:T(1,128)}', space=vmem, size = 0x12000, scoped, tag = 'internal scratch']
  %s0 = inlined_call_operand.vmem [shape: f32[16,9], index: 0, kind: input, shape index: {}]
  %s1 = inlined_call_operand.vmem [shape: f32[57,32], index: 1, kind: input, shape index: {}]
  %s2 = inlined_call_operand.vmem [shape: f32[16,12], index: 2, kind: output, shape index: {}]
  %s3 = sld [smem:[#allocation0]]
  $region18: #{temporal_model_forward.1} parent=0
    _
  %s5 = ssub.s32 1, %s3
  %s6 = scalar_select 0, %s5, %s3
  // Predicated region
  $region2: #{temporal_model_forward.1} parent=0 // pred_check
    _
  $region3: #{temporal_model_forward.1} parent=0 // pred_check_branch
    %8 = sbr.rel (0) target = $region5
  $region4: #{temporal_model_forward.1} parent=0 // pred_region
    _
  $region5: #{temporal_model_forward.1} parent=0 // pred_fallthru
    _
  // Predicated region
  $region6: #{temporal_model_forward.1} parent=0 // pred_check
    _
  $region7: #{temporal_model_forward.1} parent=0 // pred_check_branch
    %10 = sbr.rel (0) target = $region9
  $region8: #{temporal_model_forward.1} parent=0 // pred_region
    _
  $region9: #{temporal_model_forward.1} parent=0 // pred_fallthru
    _
  %v11 = vld [vmem:[%s0] sm:$0xff]
  %v12 = vld [vmem:[%s0 + $0x8] sm:$0xff]
  %v13 = vld [vmem:[%s1] sm:$0xff]
  %v14 = vld [vmem:[%s1 + $0x8] sm:$0xff]
  %v15 = vld [vmem:[%s1 + $0x10] sm:$0xff]
  %v16 = vld [vmem:[%s1 + $0x18] sm:$0xff]
  %v17 = vld [vmem:[%s1 + $0x20] sm:$0xff]
  %v18 = vld [vmem:[%s1 + $0x28] sm:$0xff]
  %v19 = vld [vmem:[%s1 + $0x30] sm:$0xff]
  %v20 = vld [vmem:[%s1 + $0x38] sm:$0x1]
  %vm21 = vcmask 72704
  %v23 = vsel %vm21, %v11, 0
  %v26 = vsel %vm21, %v12, 0
  %vm28 = vcmask 1040384
  %v30 = vsel %vm28, %v14, 0
  %32 = vmatprep.subr.mxu0 0.0
  %33 = vmatpush1.msra.mxu0 %v13
  %34 = vmatprep.subr.mxu0 0.0
  %35 = vmatpush1.msra.mxu0 %v30
  %36 = vmatprep.subr.mxu0 0.0
  %37 = vmatpush1.msra.mxu0 0.0
  %38 = vmatprep.subr.mxu0 0.0
  %39 = vmatpush1.msra.mxu0 0.0
  %40 = vmatprep.subr.mxu0 0.0
  %41 = vmatpush1.msra.mxu0 0.0
  %42 = vmatprep.subr.mxu0 0.0
  %43 = vmatpush1.msra.mxu0 0.0
  %44 = vmatprep.subr.mxu0 0.0
  %45 = vmatpush1.msra.mxu0 0.0
  %46 = vmatprep.subr.mxu0 0.0
  %47 = vmatpush1.msra.mxu0 0.0
  %48 = vmatprep.subr.mxu0 0.0
  %49 = vmatpush1.msra.mxu0 0.0
  %50 = vmatprep.subr.mxu0 0.0
  %51 = vmatpush1.msra.mxu0 0.0
  %52 = vmatprep.subr.mxu0 0.0
  %53 = vmatpush1.msra.mxu0 0.0
  %54 = vmatprep.subr.mxu0 0.0
  %55 = vmatpush1.msra.mxu0 0.0
  %56 = vmatprep.subr.mxu0 0.0
  %57 = vmatpush1.msra.mxu0 0.0
  %58 = vmatprep.subr.mxu0 0.0
  %59 = vmatpush1.msra.mxu0 0.0
  %60 = vmatprep.subr.mxu0 0.0
  %61 = vmatpush1.msra.mxu0 0.0
  %62 = vmatprep.subr.mxu0 0.0
  %63 = vmatpush1.msra.mxu0 0.0
  %64 = vmatprep.subr.mxu0 0.0
  %65 = vmatpush1.msra.mxu0 0.0
  %66 = vmatprep.subr.mxu0 0.0
  %67 = vmatpush1.msra.mxu0 0.0
  %68 = vmatprep.subr.mxu0 0.0
  %69 = vmatpush1.msra.mxu0 0.0
  %70 = vmatprep.subr.mxu0 0.0
  %71 = vmatpush1.msra.mxu0 0.0
  %72 = vmatprep.subr.mxu0 0.0
  %73 = vmatpush1.msra.mxu0 0.0
  %74 = vmatprep.subr.mxu0 0.0
  %75 = vmatpush1.msra.mxu0 0.0
  %76 = vmatprep.subr.mxu0 0.0
  %77 = vmatpush1.msra.mxu0 0.0
  %78 = vmatprep.subr.mxu0 0.0
  %79 = vmatpush1.msra.mxu0 0.0
  %80 = vmatprep.subr.mxu0 0.0
  %81 = vmatpush1.msra.mxu0 0.0
  %82 = vmatprep.subr.mxu0 0.0
  %83 = vmatpush1.msra.mxu0 0.0
  %84 = vmatprep.subr.mxu0 0.0
  %85 = vmatpush1.msra.mxu0 0.0
  %86 = vmatprep.subr.mxu0 0.0
  %87 = vmatpush1.msra.mxu0 0.0
  %88 = vmatprep.subr.mxu0 0.0
  %89 = vmatpush1.msra.mxu0 0.0
  %90 = vmatprep.subr.mxu0 0.0
  %91 = vmatpush1.msra.mxu0 0.0
  %92 = vmatprep.subr.mxu0 0.0
  %93 = vmatpush1.msra.mxu0 0.0
  %94 = vmatprep.subr.mxu0 0.0
  %95 = vmatpush1.msra.mxu0 0.0
  %96 = vmatprep.mubr.f32.mxu0 0.0
  %97 = vmatmul.mubr.f32.gmra.mrb[0].mxu0 %v23
  %v98 = vpop.f32.mrb[0].mxu0
  %v99 = vadd.f32 0.0, %v98
  %v100 = vpop.f32.mrb[0].mxu0
  %101 = vmatprep.mubr.f32.mxu0 0.0
  %102 = vmatmul.mubr.f32.gmra.mrb[0].mxu0 %v26
  %v103 = vpop.f32.mrb[0].mxu0
  %v104 = vadd.f32 0.0, %v103
  %v105 = vpop.f32.mrb[0].mxu0
  %106 = vdwg.mxu0
  %v107 = vmul.f32 %v99, 0.01
  %v108 = vmul.f32 %v104, 0.01
  %v109 = vmax.f32 %v99, %v107
  %v110 = vmax.f32 %v104, %v108
  %v112 = vsel %vm28, %v20, 0
  %114 = vmatprep.subr.mxu0 0.0
  %115 = vmatpush1.msra.mxu0 %v19
  %116 = vmatprep.subr.mxu0 0.0
  %117 = vmatpush1.msra.mxu0 %v112
  %118 = vmatprep.subr.mxu0 0.0
  %119 = vmatpush1.msra.mxu0 0.0
  %120 = vmatprep.subr.mxu0 0.0
  %121 = vmatpush1.msra.mxu0 0.0
  %122 = vmatprep.subr.mxu0 0.0
  %123 = vmatpush1.msra.mxu0 0.0
  %124 = vmatprep.subr.mxu0 0.0
  %125 = vmatpush1.msra.mxu0 0.0
  %126 = vmatprep.subr.mxu0 0.0
  %127 = vmatpush1.msra.mxu0 0.0
  %128 = vmatprep.subr.mxu0 0.0
  %129 = vmatpush1.msra.mxu0 0.0
  %130 = vmatprep.subr.mxu0 0.0
  %131 = vmatpush1.msra.mxu0 0.0
  %132 = vmatprep.subr.mxu0 0.0
  %133 = vmatpush1.msra.mxu0 0.0
  %134 = vmatprep.subr.mxu0 0.0
  %135 = vmatpush1.msra.mxu0 0.0
  %136 = vmatprep.subr.mxu0 0.0
  %137 = vmatpush1.msra.mxu0 0.0
  %138 = vmatprep.subr.mxu0 0.0
  %139 = vmatpush1.msra.mxu0 0.0
  %140 = vmatprep.subr.mxu0 0.0
  %141 = vmatpush1.msra.mxu0 0.0
  %142 = vmatprep.subr.mxu0 0.0
  %143 = vmatpush1.msra.mxu0 0.0
  %144 = vmatprep.subr.mxu0 0.0
  %145 = vmatpush1.msra.mxu0 0.0
  %146 = vmatprep.subr.mxu0 0.0
  %147 = vmatpush1.msra.mxu0 0.0
  %148 = vmatprep.subr.mxu0 0.0
  %149 = vmatpush1.msra.mxu0 0.0
  %150 = vmatprep.subr.mxu0 0.0
  %151 = vmatpush1.msra.mxu0 0.0
  %152 = vmatprep.subr.mxu0 0.0
  %153 = vmatpush1.msra.mxu0 0.0
  %154 = vmatprep.subr.mxu0 0.0
  %155 = vmatpush1.msra.mxu0 0.0
  %156 = vmatprep.subr.mxu0 0.0
  %157 = vmatpush1.msra.mxu0 0.0
  %158 = vmatprep.subr.mxu0 0.0
  %159 = vmatpush1.msra.mxu0 0.0
  %160 = vmatprep.subr.mxu0 0.0
  %161 = vmatpush1.msra.mxu0 0.0
  %162 = vmatprep.subr.mxu0 0.0
  %163 = vmatpush1.msra.mxu0 0.0
  %164 = vmatprep.subr.mxu0 0.0
  %165 = vmatpush1.msra.mxu0 0.0
  %166 = vmatprep.subr.mxu0 0.0
  %167 = vmatpush1.msra.mxu0 0.0
  %168 = vmatprep.subr.mxu0 0.0
  %169 = vmatpush1.msra.mxu0 0.0
  %170 = vmatprep.subr.mxu0 0.0
  %171 = vmatpush1.msra.mxu0 0.0
  %172 = vmatprep.subr.mxu0 0.0
  %173 = vmatpush1.msra.mxu0 0.0
  %174 = vmatprep.subr.mxu0 0.0
  %175 = vmatpush1.msra.mxu0 0.0
  %176 = vmatprep.subr.mxu0 0.0
  %177 = vmatpush1.msra.mxu0 0.0
  %178 = vmatprep.mubr.f32.mxu0 0.0
  %179 = vmatmul.mubr.f32.gmra.mrb[0].mxu0 %v23
  %v180 = vpop.f32.mrb[0].mxu0
  %v181 = vadd.f32 0.0, %v180
  %v182 = vpop.f32.mrb[0].mxu0
  %183 = vmatprep.mubr.f32.mxu0 0.0
  %184 = vmatmul.mubr.f32.gmra.mrb[0].mxu0 %v26
  %v185 = vpop.f32.mrb[0].mxu0
  %v186 = vadd.f32 0.0, %v185
  %v187 = vpop.f32.mrb[0].mxu0
  %188 = vdwg.mxu0
  %vm189 = vcmask 261120
  %v191 = vsel %vm189, %v109, 0
  %v194 = vsel %vm189, %v110, 0
  %196 = vmatprep.subr.mxu0 0.0
  %197 = vmatpush1.msra.mxu0 %v15
  %198 = vmatprep.subr.mxu0 0.0
  %199 = vmatpush1.msra.mxu0 %v16
  %200 = vmatprep.subr.mxu0 0.0
  %201 = vmatpush1.msra.mxu0 %v17
  %202 = vmatprep.subr.mxu0 0.0
  %203 = vmatpush1.msra.mxu0 %v18
  %204 = vmatprep.subr.mxu0 0.0
  %205 = vmatpush1.msra.mxu0 0.0
  %206 = vmatprep.subr.mxu0 0.0
  %207 = vmatpush1.msra.mxu0 0.0
  %208 = vmatprep.subr.mxu0 0.0
  %209 = vmatpush1.msra.mxu0 0.0
  %210 = vmatprep.subr.mxu0 0.0
  %211 = vmatpush1.msra.mxu0 0.0
  %212 = vmatprep.subr.mxu0 0.0
  %213 = vmatpush1.msra.mxu0 0.0
  %214 = vmatprep.subr.mxu0 0.0
  %215 = vmatpush1.msra.mxu0 0.0
  %216 = vmatprep.subr.mxu0 0.0
  %217 = vmatpush1.msra.mxu0 0.0
  %218 = vmatprep.subr.mxu0 0.0
  %219 = vmatpush1.msra.mxu0 0.0
  %220 = vmatprep.subr.mxu0 0.0
  %221 = vmatpush1.msra.mxu0 0.0
  %222 = vmatprep.subr.mxu0 0.0
  %223 = vmatpush1.msra.mxu0 0.0
  %224 = vmatprep.subr.mxu0 0.0
  %225 = vmatpush1.msra.mxu0 0.0
  %226 = vmatprep.subr.mxu0 0.0
  %227 = vmatpush1.msra.mxu0 0.0
  %228 = vmatprep.subr.mxu0 0.0
  %229 = vmatpush1.msra.mxu0 0.0
  %230 = vmatprep.subr.mxu0 0.0
  %231 = vmatpush1.msra.mxu0 0.0
  %232 = vmatprep.subr.mxu0 0.0
  %233 = vmatpush1.msra.mxu0 0.0
  %234 = vmatprep.subr.mxu0 0.0
  %235 = vmatpush1.msra.mxu0 0.0
  %236 = vmatprep.subr.mxu0 0.0
  %237 = vmatpush1.msra.mxu0 0.0
  %238 = vmatprep.subr.mxu0 0.0
  %239 = vmatpush1.msra.mxu0 0.0
  %240 = vmatprep.subr.mxu0 0.0
  %241 = vmatpush1.msra.mxu0 0.0
  %242 = vmatprep.subr.mxu0 0.0
  %243 = vmatpush1.msra.mxu0 0.0
  %244 = vmatprep.subr.mxu0 0.0
  %245 = vmatpush1.msra.mxu0 0.0
  %246 = vmatprep.subr.mxu0 0.0
  %247 = vmatpush1.msra.mxu0 0.0
  %248 = vmatprep.subr.mxu0 0.0
  %249 = vmatpush1.msra.mxu0 0.0
  %250 = vmatprep.subr.mxu0 0.0
  %251 = vmatpush1.msra.mxu0 0.0
  %252 = vmatprep.subr.mxu0 0.0
  %253 = vmatpush1.msra.mxu0 0.0
  %254 = vmatprep.subr.mxu0 0.0
  %255 = vmatpush1.msra.mxu0 0.0
  %256 = vmatprep.subr.mxu0 0.0
  %257 = vmatpush1.msra.mxu0 0.0
  %258 = vmatprep.subr.mxu0 0.0
  %259 = vmatpush1.msra.mxu0 0.0
  %260 = vmatprep.mubr.f32.mxu0 0.0
  %261 = vmatmul.mubr.f32.gmra.mrb[0].mxu0 %v191
  %v262 = vpop.f32.mrb[0].mxu0
  %v263 = vadd.f32 %v181, %v262
  %v264 = vpop.f32.mrb[0].mxu0
  %265 = vmatprep.mubr.f32.mxu0 0.0
  %266 = vmatmul.mubr.f32.gmra.mrb[0].mxu0 %v194
  %v267 = vpop.f32.mrb[0].mxu0
  %v268 = vadd.f32 %v186, %v267
  %v269 = vpop.f32.mrb[0].mxu0
  %270 = vdwg.mxu0
  %vm271 = vcmask 97280
  %272 = vst.msk [vmem:[%s2] sm:$0xff] %vm271, %v263
  %273 = vst.msk [vmem:[%s2 + $0x8] sm:$0xff] %vm271, %v268
  // Predicated region
  $region10: #{temporal_model_forward.1} parent=0 // pred_check
    _
  $region11: #{temporal_model_forward.1} parent=0 // pred_check_branch
    %275 = sbr.rel (0) target = $region13
  $region12: #{temporal_model_forward.1} parent=0 // pred_region
    _
  $region13: #{temporal_model_forward.1} parent=0 // pred_fallthru
    _
  // Predicated region
  $region14: #{temporal_model_forward.1} parent=0 // pred_check
    _
  $region15: #{temporal_model_forward.1} parent=0 // pred_check_branch
    %277 = sbr.rel (0) target = $region17
  $region16: #{temporal_model_forward.1} parent=0 // pred_region
    _
  $region17: #{temporal_model_forward.1} parent=0 // pred_fallthru
    _

</llo_original>
